<compile_context>
chip_gen: v7x
topology: tpu7x:2x2x1
jax: 0.10.0
libtpu: 0.0.40
codegen_flags: <defaults>
</compile_context>

<pallas_src>
import functools

import jax
import jax.numpy as jnp
from jax.experimental import pallas as pl
from jax.experimental.pallas import tpu as pltpu

EMB = 32          # emb_dim = CLIP_ResNet.output_size (small synthetic value)
EMB_P = 128       # lane-padded embedding width (vreg-aligned, lane-dense)
N_FILM = 4        # number of FiLM controllers in FiLMedModel
IMG_C = 3         # RGB
H = W = 8         # spatial size of the encoder feature map
HW = H * W
TOK = 16          # text-feature dim fed to the (folded) text head

GB_W = 2 * N_FILM * EMB_P     # 1024 : [gamma_0..3 | beta_0..3], each 128 lanes
BETA_OFF = N_FILM * EMB_P     # 512

# bf16 weight-slab row offsets (multiples of the 16-row bf16 sublane tile).
R_ENC, R_GB, R_PROJ = 0, 16, 32
WSLAB_ROWS = R_PROJ + EMB_P   # 160
# f32 bias-slab row offsets (multiples of the 8-row f32 sublane tile).
RB_ENC, RB_GB, RB_PROJ = 0, 8, 16
BSLAB_ROWS = RB_PROJ + 8      # 24


def _vmem_specs(n):
    return [pl.BlockSpec(memory_space=pltpu.MemorySpace.VMEM) for _ in range(n)]


# ----------------------------- fused Pallas kernel ---------------------------

def fused_forward_kernel(x_ref, mis_ref, w_ref, b_ref, out_ref, *, b, hw):
    bf16 = jnp.bfloat16
    f32 = jnp.float32

    # Static slab views (zero-cost slices of the two param refs).
    w_enc = w_ref[R_ENC:R_ENC + IMG_C, 0:EMB_P]            # (3, 128)   bf16
    w_gb = w_ref[R_GB:R_GB + TOK, :]                       # (16, 1024) bf16
    w_proj = w_ref[R_PROJ:R_PROJ + EMB_P, 0:EMB_P]         # (128, 128) bf16
    b_enc = b_ref[RB_ENC:RB_ENC + 1, 0:EMB_P]              # (1, 128)   f32
    b_gb = b_ref[RB_GB:RB_GB + 1, :]                       # (1, 1024)  f32 (+1 folded into gamma cols)
    b_proj = b_ref[RB_PROJ:RB_PROJ + 1, 0:EMB_P]           # (1, 128)   f32

    # ---- image stem: ONE MXU matmul for all 3 images (3*b*hw, C)@(C, EMB_P) ----
    feats = jnp.dot(x_ref[...].astype(bf16), w_enc, preferred_element_type=f32)
    feats = jnp.maximum(feats + b_enc, 0.0)                # ReLU (f32 VPU)
    zf = feats.reshape(3 * b, hw, EMB_P)                   # (3b, hw, EMB_P)

    # ---- FiLM params for all 4 controllers, text head folded in:
    #      ONE (b,16)@(16,1024) dot instead of three dots.
    gb = jnp.dot(mis_ref[...].astype(bf16), w_gb,
                 preferred_element_type=f32) + b_gb        # (b, 1024)

    # ---- apply the 4 FiLM controllers to z1 (static unroll; slices are whole
    #      128-lane vreg blocks).  '+1' already folded into the gamma bias.
    z1 = zf[:b]                                            # (b, hw, EMB_P)
    for i in range(N_FILM):
        g = gb[:, i * EMB_P:(i + 1) * EMB_P]               # (b, EMB_P) == 1+gamma_i
        bt = gb[:, BETA_OFF + i * EMB_P:BETA_OFF + (i + 1) * EMB_P]
        z1 = jnp.maximum(g[:, None, :] * z1 + bt[:, None, :], 0.0)

    # ---- 'b c h w -> b c' max for all three images, then ONE fused
    #      all-shared projection dot and ONE lane-dense output store.
    # TODO(synk): task-indexed projection branch (per-task Linear) not implemented.
    z_all = jnp.concatenate([z1, zf[b:]], axis=0)          # (3b, hw, EMB_P) leading-dim concat
    z_max = jnp.max(z_all, axis=1)                         # (3b, EMB_P)
    out_ref[...] = jnp.dot(z_max.astype(bf16), w_proj,
                           preferred_element_type=f32) + b_proj


# ------------------------------- parameters ----------------------------------

def init_params(key):
    """Unfused 'reference' parameters (mirror the PyTorch module structure)."""
    ks = jax.random.split(key, 10)
    s = 0.1
    return {
        # TODO(synk): CLIP_ResNet approximated by a 1x1 conv stem (+ReLU).
        "w_enc": s * jax.random.normal(ks[0], (IMG_C, EMB), jnp.float32),
        "b_enc": s * jax.random.normal(ks[1], (1, EMB), jnp.float32),
        # TODO(synk): CLIP text transformer approximated by a single linear
        # (no activation) -- this is what makes the pack-time fold exact.
        "w_txt": s * jax.random.normal(ks[2], (TOK, EMB), jnp.float32),
        "b_txt": s * jax.random.normal(ks[3], (1, EMB), jnp.float32),
        # 4 FiLM controllers: gamma / beta heads.
        # TODO(synk): FiLM shared/task_specific split not specified; canonical FiLM used.
        "w_film_g": s * jax.random.normal(ks[4], (N_FILM, EMB, EMB), jnp.float32),
        "b_film_g": s * jax.random.normal(ks[5], (N_FILM, EMB), jnp.float32),
        "w_film_b": s * jax.random.normal(ks[6], (N_FILM, EMB, EMB), jnp.float32),
        "b_film_b": s * jax.random.normal(ks[7], (N_FILM, EMB), jnp.float32),
        # all-shared projection: nn.Linear(emb_dim, emb_dim)
        "w_proj": s * jax.random.normal(ks[8], (EMB, EMB), jnp.float32),
        "b_proj": s * jax.random.normal(ks[9], (1, EMB), jnp.float32),
    }


def pack_params(p):
    """One-time repack:
       * fold the text head into the FiLM gamma/beta heads (exact: no
         activation on l), and fold FiLM's '+1' into the gamma bias,
       * merge the 4 gamma + 4 beta heads into ONE (TOK, 1024) matrix,
       * zero-pad EMB -> EMB_P (lane-dense),
       * concatenate all bf16 matmul weights into ONE slab and all f32 biases
         into ONE slab (row offsets aligned to the dtype sublane tile)."""
    f32 = jnp.float32
    wt, bt = p["w_txt"], p["b_txt"]                      # (TOK, EMB), (1, EMB)

    w_gb = jnp.zeros((TOK, GB_W), f32)
    b_gb = jnp.zeros((1, GB_W), f32)
    for i in range(N_FILM):
        gcol = i * EMB_P
        bcol = BETA_OFF + i * EMB_P
        w_gb = w_gb.at[:, gcol:gcol + EMB].set(wt @ p["w_film_g"][i])
        w_gb = w_gb.at[:, bcol:bcol + EMB].set(wt @ p["w_film_b"][i])
        # gamma bias gets the '+1' fold (valid columns only; padded lanes stay 0).
        b_gb = b_gb.at[0, gcol:gcol + EMB].set(
            (bt @ p["w_film_g"][i])[0] + p["b_film_g"][i] + 1.0)
        b_gb = b_gb.at[0, bcol:bcol + EMB].set(
            (bt @ p["w_film_b"][i])[0] + p["b_film_b"][i])

    # bf16 weight slab (rows at multiples of 16 = bf16 sublane tile).
    wslab = jnp.zeros((WSLAB_ROWS, GB_W), f32)
    wslab = wslab.at[R_ENC:R_ENC + IMG_C, 0:EMB].set(p["w_enc"])
    wslab = wslab.at[R_GB:R_GB + TOK, :].set(w_gb)
    wslab = wslab.at[R_PROJ:R_PROJ + EMB, 0:EMB].set(p["w_proj"])

    # f32 bias slab (rows at multiples of 8 = f32 sublane tile).
    bslab = jnp.zeros((BSLAB_ROWS, GB_W), f32)
    bslab = bslab.at[RB_ENC:RB_ENC + 1, 0:EMB].set(p["b_enc"])
    bslab = bslab.at[RB_GB:RB_GB + 1, :].set(b_gb)
    bslab = bslab.at[RB_PROJ:RB_PROJ + 1, 0:EMB].set(p["b_proj"])

    return {"w_slab": wslab.astype(jnp.bfloat16), "b_slab": bslab}


# --------------------------------- forward -----------------------------------

def filmed_forward(params, x1, x2, x3, mission, task=None):
    b = x1.shape[0]
    # NCHW -> channels-last for ALL three images in one small fused XLA copy
    # (~4.5 KiB at these shapes).
    # TODO(synk): doing this (3,64) sublane/lane transpose in-kernel would drop
    # the wrapper op, but an unaligned XLU transpose at this size is not
    # reliably lowered by Mosaic, so the tiny wrapper copy stays.
    x_all = jnp.stack([x1, x2, x3], axis=0)               # (3, B, C, H, W)
    x_all = jnp.transpose(x_all, (0, 1, 3, 4, 2))         # (3, B, H, W, C)
    x_all = x_all.reshape(3 * b * HW, IMG_C)              # (3*B*HW, C)

    kernel = functools.partial(fused_forward_kernel, b=b, hw=HW)
    # Scaling notes (perf review):
    #  * resident footprint is ~200-250 KiB per batch element; the gridless
    #    design is fine up to B ~O(60) on v5e / O(130) on v6e-v7x default
    #    scoped VMEM -- beyond that, switch to a batch grid with BlockSpec
    #    tiling rather than raising vmem_limit_bytes.
    #  * TODO(synk): at larger B add a batch grid axis with
    #    dimension_semantics=("parallel",) to shard across v7x's 2 TensorCores.
    out = pl.pallas_call(
        kernel,
        out_shape=jax.ShapeDtypeStruct((3 * b, EMB_P), jnp.float32),
        in_specs=_vmem_specs(4),
        out_specs=pl.BlockSpec(memory_space=pltpu.MemorySpace.VMEM),
    )(x_all, mission, params["w_slab"], params["b_slab"])

    # Strip the lane padding (EMB_P -> EMB) and split p1 / z2 / z3.
    p1 = out[:b, :EMB]
    z2 = out[b:2 * b, :EMB]
    z3 = out[2 * b:, :EMB]
    return p1, z2, z3


# ----------------------------------- main -------------------------------------

if __name__ == "__main__":
    key = jax.random.PRNGKey(0)
    k_params, k1, k2, k3, km = jax.random.split(key, 5)

    params = pack_params(init_params(k_params))

    B = 2
    x1 = jax.random.normal(k1, (B, IMG_C, H, W), jnp.float32)   # NCHW like PyTorch
    x2 = jax.random.normal(k2, (B, IMG_C, H, W), jnp.float32)
    x3 = jax.random.normal(k3, (B, IMG_C, H, W), jnp.float32)
    mission = jax.random.normal(km, (B, TOK), jnp.float32)

    p1, z2, z3 = jax.jit(filmed_forward)(params, x1, x2, x3, mission)
    jax.block_until_ready((p1, z2, z3))

    assert p1.shape == (B, EMB) and z2.shape == (B, EMB) and z3.shape == (B, EMB)
    assert bool(jnp.isfinite(p1).all() & jnp.isfinite(z2).all() & jnp.isfinite(z3).all())
    print("KERNEL_OK")
</pallas_src>

<mosaic_0001>
module attributes {stable_mosaic.version = 11 : i64} {
  func.func @fused_forward_kernel(%arg0: memref<384x3xf32, #tpu.memory_space<vmem>>, %arg1: memref<2x16xf32, #tpu.memory_space<vmem>>, %arg2: memref<160x1024xbf16, #tpu.memory_space<vmem>>, %arg3: memref<24x1024xf32, #tpu.memory_space<vmem>>, %arg4: memref<6x128xf32, #tpu.memory_space<vmem>>) attributes {dimension_semantics = [], scalar_prefetch = 0 : i64, scratch_operands = 0 : i64, tpu.core_type = #tpu.core_type<tc>} {
    %c0 = arith.constant 0 : index
    %c0_0 = arith.constant 0 : index
    %0 = vector.load %arg2[%c0, %c0_0] : memref<160x1024xbf16, #tpu.memory_space<vmem>>, vector<3x128xbf16>
    %c16 = arith.constant 16 : index
    %c0_1 = arith.constant 0 : index
    %1 = vector.load %arg2[%c16, %c0_1] : memref<160x1024xbf16, #tpu.memory_space<vmem>>, vector<16x1024xbf16>
    %c32 = arith.constant 32 : index
    %c0_2 = arith.constant 0 : index
    %2 = vector.load %arg2[%c32, %c0_2] : memref<160x1024xbf16, #tpu.memory_space<vmem>>, vector<128x128xbf16>
    %c0_3 = arith.constant 0 : index
    %c0_4 = arith.constant 0 : index
    %3 = vector.load %arg3[%c0_3, %c0_4] : memref<24x1024xf32, #tpu.memory_space<vmem>>, vector<1x128xf32>
    %c8 = arith.constant 8 : index
    %c0_5 = arith.constant 0 : index
    %4 = vector.load %arg3[%c8, %c0_5] : memref<24x1024xf32, #tpu.memory_space<vmem>>, vector<1x1024xf32>
    %c16_6 = arith.constant 16 : index
    %c0_7 = arith.constant 0 : index
    %5 = vector.load %arg3[%c16_6, %c0_7] : memref<24x1024xf32, #tpu.memory_space<vmem>>, vector<1x128xf32>
    %c0_8 = arith.constant 0 : index
    %c0_9 = arith.constant 0 : index
    %6 = vector.load %arg0[%c0_8, %c0_9] : memref<384x3xf32, #tpu.memory_space<vmem>>, vector<384x3xf32>
    %7 = arith.truncf %6 : vector<384x3xf32> to vector<384x3xbf16>
    %cst = arith.constant dense<0.000000e+00> : vector<384x128xf32>
    %8 = tpu.matmul %7, %0, %cst {dimension_numbers = #tpu.dot_dimension_numbers<[1], [0], [0], [1], [0, 0, 1, 1], [], []>} : vector<384x3xbf16>, vector<3x128xbf16>, vector<384x128xf32> -> vector<384x128xf32>
    %9 = vector.broadcast %3 : vector<1x128xf32> to vector<384x128xf32>
    %10 = arith.addf %8, %9 : vector<384x128xf32>
    %cst_10 = arith.constant 0.000000e+00 : f32
    %11 = vector.broadcast %cst_10 : f32 to vector<384x128xf32>
    %12 = arith.maximumf %10, %11 : vector<384x128xf32>
    %13 = vector.shape_cast %12 : vector<384x128xf32> to vector<6x64x128xf32>
    %c0_11 = arith.constant 0 : index
    %c0_12 = arith.constant 0 : index
    %14 = vector.load %arg1[%c0_11, %c0_12] : memref<2x16xf32, #tpu.memory_space<vmem>>, vector<2x16xf32>
    %15 = arith.truncf %14 : vector<2x16xf32> to vector<2x16xbf16>
    %cst_13 = arith.constant dense<0.000000e+00> : vector<2x1024xf32>
    %16 = tpu.matmul %15, %1, %cst_13 {dimension_numbers = #tpu.dot_dimension_numbers<[1], [0], [0], [1], [0, 0, 1, 1], [], []>} : vector<2x16xbf16>, vector<16x1024xbf16>, vector<2x1024xf32> -> vector<2x1024xf32>
    %17 = vector.broadcast %4 : vector<1x1024xf32> to vector<2x1024xf32>
    %18 = arith.addf %16, %17 : vector<2x1024xf32>
    %19 = vector.extract_strided_slice %13 {offsets = [0, 0, 0], sizes = [2, 64, 128], strides = [1, 1, 1]} : vector<6x64x128xf32> to vector<2x64x128xf32>
    %20 = vector.extract_strided_slice %18 {offsets = [0, 0], sizes = [2, 128], strides = [1, 1]} : vector<2x1024xf32> to vector<2x128xf32>
    %21 = vector.extract_strided_slice %18 {offsets = [0, 512], sizes = [2, 128], strides = [1, 1]} : vector<2x1024xf32> to vector<2x128xf32>
    %22 = vector.shape_cast %20 : vector<2x128xf32> to vector<2x1x128xf32>
    %23 = vector.broadcast %22 : vector<2x1x128xf32> to vector<2x64x128xf32>
    %24 = arith.mulf %23, %19 : vector<2x64x128xf32>
    %25 = vector.shape_cast %21 : vector<2x128xf32> to vector<2x1x128xf32>
    %26 = vector.broadcast %25 : vector<2x1x128xf32> to vector<2x64x128xf32>
    %27 = arith.addf %24, %26 : vector<2x64x128xf32>
    %cst_14 = arith.constant 0.000000e+00 : f32
    %28 = vector.broadcast %cst_14 : f32 to vector<2x64x128xf32>
    %29 = arith.maximumf %27, %28 : vector<2x64x128xf32>
    %30 = vector.extract_strided_slice %18 {offsets = [0, 128], sizes = [2, 128], strides = [1, 1]} : vector<2x1024xf32> to vector<2x128xf32>
    %31 = vector.extract_strided_slice %18 {offsets = [0, 640], sizes = [2, 128], strides = [1, 1]} : vector<2x1024xf32> to vector<2x128xf32>
    %32 = vector.shape_cast %30 : vector<2x128xf32> to vector<2x1x128xf32>
    %33 = vector.broadcast %32 : vector<2x1x128xf32> to vector<2x64x128xf32>
    %34 = arith.mulf %33, %29 : vector<2x64x128xf32>
    %35 = vector.shape_cast %31 : vector<2x128xf32> to vector<2x1x128xf32>
    %36 = vector.broadcast %35 : vector<2x1x128xf32> to vector<2x64x128xf32>
    %37 = arith.addf %34, %36 : vector<2x64x128xf32>
    %cst_15 = arith.constant 0.000000e+00 : f32
    %38 = vector.broadcast %cst_15 : f32 to vector<2x64x128xf32>
    %39 = arith.maximumf %37, %38 : vector<2x64x128xf32>
    %40 = vector.extract_strided_slice %18 {offsets = [0, 256], sizes = [2, 128], strides = [1, 1]} : vector<2x1024xf32> to vector<2x128xf32>
    %41 = vector.extract_strided_slice %18 {offsets = [0, 768], sizes = [2, 128], strides = [1, 1]} : vector<2x1024xf32> to vector<2x128xf32>
    %42 = vector.shape_cast %40 : vector<2x128xf32> to vector<2x1x128xf32>
    %43 = vector.broadcast %42 : vector<2x1x128xf32> to vector<2x64x128xf32>
    %44 = arith.mulf %43, %39 : vector<2x64x128xf32>
    %45 = vector.shape_cast %41 : vector<2x128xf32> to vector<2x1x128xf32>
    %46 = vector.broadcast %45 : vector<2x1x128xf32> to vector<2x64x128xf32>
    %47 = arith.addf %44, %46 : vector<2x64x128xf32>
    %cst_16 = arith.constant 0.000000e+00 : f32
    %48 = vector.broadcast %cst_16 : f32 to vector<2x64x128xf32>
    %49 = arith.maximumf %47, %48 : vector<2x64x128xf32>
    %50 = vector.extract_strided_slice %18 {offsets = [0, 384], sizes = [2, 128], strides = [1, 1]} : vector<2x1024xf32> to vector<2x128xf32>
    %51 = vector.extract_strided_slice %18 {offsets = [0, 896], sizes = [2, 128], strides = [1, 1]} : vector<2x1024xf32> to vector<2x128xf32>
    %52 = vector.shape_cast %50 : vector<2x128xf32> to vector<2x1x128xf32>
    %53 = vector.broadcast %52 : vector<2x1x128xf32> to vector<2x64x128xf32>
    %54 = arith.mulf %53, %49 : vector<2x64x128xf32>
    %55 = vector.shape_cast %51 : vector<2x128xf32> to vector<2x1x128xf32>
    %56 = vector.broadcast %55 : vector<2x1x128xf32> to vector<2x64x128xf32>
    %57 = arith.addf %54, %56 : vector<2x64x128xf32>
    %cst_17 = arith.constant 0.000000e+00 : f32
    %58 = vector.broadcast %cst_17 : f32 to vector<2x64x128xf32>
    %59 = arith.maximumf %57, %58 : vector<2x64x128xf32>
    %60 = vector.extract_strided_slice %13 {offsets = [2, 0, 0], sizes = [4, 64, 128], strides = [1, 1, 1]} : vector<6x64x128xf32> to vector<4x64x128xf32>
    %61 = tpu.concatenate %59, %60 in 0 : vector<2x64x128xf32>, vector<4x64x128xf32> -> vector<6x64x128xf32>
    %cst_18 = arith.constant dense<0xFF800000> : vector<6x128xf32>
    %62 = vector.multi_reduction <maximumf>, %61, %cst_18 [1] : vector<6x64x128xf32> to vector<6x128xf32>
    %63 = arith.truncf %62 : vector<6x128xf32> to vector<6x128xbf16>
    %cst_19 = arith.constant dense<0.000000e+00> : vector<6x128xf32>
    %64 = tpu.matmul %63, %2, %cst_19 {dimension_numbers = #tpu.dot_dimension_numbers<[1], [0], [0], [1], [0, 0, 1, 1], [], []>} : vector<6x128xbf16>, vector<128x128xbf16>, vector<6x128xf32> -> vector<6x128xf32>
    %65 = vector.broadcast %5 : vector<1x128xf32> to vector<6x128xf32>
    %66 = arith.addf %64, %65 : vector<6x128xf32>
    %c0_20 = arith.constant 0 : index
    %c0_21 = arith.constant 0 : index
    %67 = vector.load %arg4[%c0_20, %c0_21] : memref<6x128xf32, #tpu.memory_space<vmem>>, vector<6x128xf32>
    tpu.vector_store %arg4[%c0_20, %c0_21], %66 {strides = array<i32>} : memref<6x128xf32, #tpu.memory_space<vmem>>, vector<6x128xf32>,
    return
  }
}

</mosaic_0001>

<llo_original>
// kernel: filmed_forward.1
$region0: #{filmed_forward.1}
  #allocation0 [shape = 'u32[]', space=smem, size = 0x4, offset = 0x4, fixed_abs, tag = 'smem constant byte address 0x4 - core index']
  #allocation1 [shape = 'u32[144,128]{1,0:T(1,128)}', space=vmem, size = 0x12000, scoped, tag = 'internal scratch']
  %s0 = inlined_call_operand.vmem [shape: f32[384,3], index: 0, kind: input, shape index: {}]
  %s1 = inlined_call_operand.vmem [shape: f32[2,16], index: 1, kind: input, shape index: {}]
  %s2 = inlined_call_operand.vmem [shape: bf16[160,1024], index: 2, kind: input, shape index: {}]
  %s3 = inlined_call_operand.vmem [shape: f32[24,1024], index: 3, kind: input, shape index: {}]
  %s4 = inlined_call_operand.vmem [shape: f32[6,128], index: 4, kind: output, shape index: {}]
  %s5 = sld [smem:[#allocation0]]
  $region26: #{filmed_forward.1} parent=0
    _
  %s7 = ssub.s32 1, %s5
  %s8 = scalar_select 0, %s7, %s5
  // Predicated region
  $region2: #{filmed_forward.1} parent=0 // pred_check
    _
  $region3: #{filmed_forward.1} parent=0 // pred_check_branch
    %10 = sbr.rel (0) target = $region5
  $region4: #{filmed_forward.1} parent=0 // pred_region
    _
  $region5: #{filmed_forward.1} parent=0 // pred_fallthru
    _
  // Predicated region
  $region6: #{filmed_forward.1} parent=0 // pred_check
    _
  $region7: #{filmed_forward.1} parent=0 // pred_check_branch
    %12 = sbr.rel (0) target = $region9
  $region8: #{filmed_forward.1} parent=0 // pred_region
    _
  $region9: #{filmed_forward.1} parent=0 // pred_fallthru
    _
  // Predicated region
  $region10: #{filmed_forward.1} parent=0 // pred_check
    _
  $region11: #{filmed_forward.1} parent=0 // pred_check_branch
    %14 = sbr.rel (0) target = $region13
  $region12: #{filmed_forward.1} parent=0 // pred_region
    _
  $region13: #{filmed_forward.1} parent=0 // pred_fallthru
    _
  // Predicated region
  $region14: #{filmed_forward.1} parent=0 // pred_check
    _
  $region15: #{filmed_forward.1} parent=0 // pred_check_branch
    %16 = sbr.rel (0) target = $region17
  $region16: #{filmed_forward.1} parent=0 // pred_region
    _
  $region17: #{filmed_forward.1} parent=0 // pred_fallthru
    _
  %v18 = vld [vmem:[%s2] sm:$0x3]
  %v19 = vld [vmem:[%s2 + $0x40] sm:$0xff]
  %v20 = vld [vmem:[%s2 + $0x48] sm:$0xff]
  %v21 = vld [vmem:[%s2 + $0x50] sm:$0xff]
  %v22 = vld [vmem:[%s2 + $0x58] sm:$0xff]
  %v23 = vld [vmem:[%s2 + $0x60] sm:$0xff]
  %v24 = vld [vmem:[%s2 + $0x68] sm:$0xff]
  %v25 = vld [vmem:[%s2 + $0x70] sm:$0xff]
  %v26 = vld [vmem:[%s2 + $0x78] sm:$0xff]
  %v27 = vld [vmem:[%s2 + $0x80] sm:$0xf]
  %v28 = vld [vmem:[%s2 + $0xa0] sm:$0xf]
  %v29 = vld [vmem:[%s2 + $0xc0] sm:$0xf]
  %v30 = vld [vmem:[%s2 + $0xe0] sm:$0xf]
  %v31 = vld [vmem:[%s2 + $0x100] sm:$0xf]
  %v32 = vld [vmem:[%s2 + $0x120] sm:$0xf]
  %v33 = vld [vmem:[%s2 + $0x140] sm:$0xf]
  %v34 = vld [vmem:[%s2 + $0x160] sm:$0xf]
  %v35 = vld [vmem:[%s2 + $0x180] sm:$0xf]
  %v36 = vld [vmem:[%s2 + $0x1a0] sm:$0xf]
  %v37 = vld [vmem:[%s2 + $0x1c0] sm:$0xf]
  %v38 = vld [vmem:[%s2 + $0x1e0] sm:$0xf]
  %v39 = vld [vmem:[%s2 + $0x200] sm:$0xf]
  %v40 = vld [vmem:[%s2 + $0x220] sm:$0xf]
  %v41 = vld [vmem:[%s2 + $0x240] sm:$0xf]
  %v42 = vld [vmem:[%s2 + $0x260] sm:$0xf]
  %v43 = vld [vmem:[%s3] ss:$0 sm:$0xff]
  %s44 = scalar_lea.vmem %s3, 64
  %v45 = vld [vmem:[%s44] ss:$8 sm:$0xf]
  %v46 = vld [vmem:[%s44] ss:$8 sm:$0xf0]
  %v47 = vor.u32 %v45, %v46
  %v48 = vld [vmem:[%s3 + $0x80] ss:$0 sm:$0xff]
  %v49 = vld [vmem:[%s0] sm:$0xff]
  %v50 = vld [vmem:[%s0 + $0x8] sm:$0xff]
  %v51 = vld [vmem:[%s0 + $0x10] sm:$0xff]
  %v52 = vld [vmem:[%s0 + $0x18] sm:$0xff]
  %v53 = vld [vmem:[%s0 + $0x20] sm:$0xff]
  %v54 = vld [vmem:[%s0 + $0x28] sm:$0xff]
  %v55 = vld [vmem:[%s0 + $0x30] sm:$0xff]
  %v56 = vld [vmem:[%s0 + $0x38] sm:$0xff]
  %v57 = vld [vmem:[%s0 + $0x40] sm:$0xff]
  %v58 = vld [vmem:[%s0 + $0x48] sm:$0xff]
  %v59 = vld [vmem:[%s0 + $0x50] sm:$0xff]
  %v60 = vld [vmem:[%s0 + $0x58] sm:$0xff]
  %v61 = vld [vmem:[%s0 + $0x60] sm:$0xff]
  %v62 = vld [vmem:[%s0 + $0x68] sm:$0xff]
  %v63 = vld [vmem:[%s0 + $0x70] sm:$0xff]
  %v64 = vld [vmem:[%s0 + $0x78] sm:$0xff]
  %v65 = vld [vmem:[%s0 + $0x80] sm:$0xff]
  %v66 = vld [vmem:[%s0 + $0x88] sm:$0xff]
  %v67 = vld [vmem:[%s0 + $0x90] sm:$0xff]
  %v68 = vld [vmem:[%s0 + $0x98] sm:$0xff]
  %v69 = vld [vmem:[%s0 + $0xa0] sm:$0xff]
  %v70 = vld [vmem:[%s0 + $0xa8] sm:$0xff]
  %v71 = vld [vmem:[%s0 + $0xb0] sm:$0xff]
  %v72 = vld [vmem:[%s0 + $0xb8] sm:$0xff]
  %v73 = vld [vmem:[%s0 + $0xc0] sm:$0xff]
  %v74 = vld [vmem:[%s0 + $0xc8] sm:$0xff]
  %v75 = vld [vmem:[%s0 + $0xd0] sm:$0xff]
  %v76 = vld [vmem:[%s0 + $0xd8] sm:$0xff]
  %v77 = vld [vmem:[%s0 + $0xe0] sm:$0xff]
  %v78 = vld [vmem:[%s0 + $0xe8] sm:$0xff]
  %v79 = vld [vmem:[%s0 + $0xf0] sm:$0xff]
  %v80 = vld [vmem:[%s0 + $0xf8] sm:$0xff]
  %v81 = vld [vmem:[%s0 + $0x100] sm:$0xff]
  %v82 = vld [vmem:[%s0 + $0x108] sm:$0xff]
  %v83 = vld [vmem:[%s0 + $0x110] sm:$0xff]
  %v84 = vld [vmem:[%s0 + $0x118] sm:$0xff]
  %v85 = vld [vmem:[%s0 + $0x120] sm:$0xff]
  %v86 = vld [vmem:[%s0 + $0x128] sm:$0xff]
  %v87 = vld [vmem:[%s0 + $0x130] sm:$0xff]
  %v88 = vld [vmem:[%s0 + $0x138] sm:$0xff]
  %v89 = vld [vmem:[%s0 + $0x140] sm:$0xff]
  %v90 = vld [vmem:[%s0 + $0x148] sm:$0xff]
  %v91 = vld [vmem:[%s0 + $0x150] sm:$0xff]
  %v92 = vld [vmem:[%s0 + $0x158] sm:$0xff]
  %v93 = vld [vmem:[%s0 + $0x160] sm:$0xff]
  %v94 = vld [vmem:[%s0 + $0x168] sm:$0xff]
  %v95 = vld [vmem:[%s0 + $0x170] sm:$0xff]
  %v96 = vld [vmem:[%s0 + $0x178] sm:$0xff]
  %v97 = vpack.c.bf16 %v50, %v49
  %v98 = vpack.c.bf16 %v52, %v51
  %v99 = vpack.c.bf16 %v54, %v53
  %v100 = vpack.c.bf16 %v56, %v55
  %v101 = vpack.c.bf16 %v58, %v57
  %v102 = vpack.c.bf16 %v60, %v59
  %v103 = vpack.c.bf16 %v62, %v61
  %v104 = vpack.c.bf16 %v64, %v63
  %v105 = vpack.c.bf16 %v66, %v65
  %v106 = vpack.c.bf16 %v68, %v67
  %v107 = vpack.c.bf16 %v70, %v69
  %v108 = vpack.c.bf16 %v72, %v71
  %v109 = vpack.c.bf16 %v74, %v73
  %v110 = vpack.c.bf16 %v76, %v75
  %v111 = vpack.c.bf16 %v78, %v77
  %v112 = vpack.c.bf16 %v80, %v79
  %v113 = vpack.c.bf16 %v82, %v81
  %v114 = vpack.c.bf16 %v84, %v83
  %v115 = vpack.c.bf16 %v86, %v85
  %v116 = vpack.c.bf16 %v88, %v87
  %v117 = vpack.c.bf16 %v90, %v89
  %v118 = vpack.c.bf16 %v92, %v91
  %v119 = vpack.c.bf16 %v94, %v93
  %v120 = vpack.c.bf16 %v96, %v95
  %vm121 = vcmask 23552
  %v123 = vsel %vm121, %v97, 0
  %v126 = vsel %vm121, %v98, 0
  %v129 = vsel %vm121, %v99, 0
  %v132 = vsel %vm121, %v100, 0
  %v135 = vsel %vm121, %v101, 0
  %v138 = vsel %vm121, %v102, 0
  %v141 = vsel %vm121, %v103, 0
  %v144 = vsel %vm121, %v104, 0
  %v147 = vsel %vm121, %v105, 0
  %v150 = vsel %vm121, %v106, 0
  %v153 = vsel %vm121, %v107, 0
  %v156 = vsel %vm121, %v108, 0
  %v159 = vsel %vm121, %v109, 0
  %v162 = vsel %vm121, %v110, 0
  %v165 = vsel %vm121, %v111, 0
  %v168 = vsel %vm121, %v112, 0
  %v171 = vsel %vm121, %v113, 0
  %v174 = vsel %vm121, %v114, 0
  %v177 = vsel %vm121, %v115, 0
  %v180 = vsel %vm121, %v116, 0
  %v183 = vsel %vm121, %v117, 0
  %v186 = vsel %vm121, %v118, 0
  %v189 = vsel %vm121, %v119, 0
  %v192 = vsel %vm121, %v120, 0
  %vm194 = vcmask 1040384
  %vm195 = vcmask 1041408
  %v196 = vsel %vm194, 4294967295, 65535
  %v197 = vsel %vm195, %v196, 0
  %v199 = vand.u32 %v18, %v197
  %201 = vmatprep.subr.bf16.mxu0 0
  %202 = vmatpush1.bf16.msra.mxu0 %v199
  %203 = vmatprep.subr.bf16.mxu0 0
  %204 = vmatpush1.bf16.msra.mxu0 0
  %205 = vmatprep.subr.bf16.mxu0 0
  %206 = vmatpush1.bf16.msra.mxu0 0
  %207 = vmatprep.subr.bf16.mxu0 0
  %208 = vmatpush1.bf16.msra.mxu0 0
  %209 = vmatprep.subr.bf16.mxu0 0
  %210 = vmatpush1.bf16.msra.mxu0 0
  %211 = vmatprep.subr.bf16.mxu0 0
  %212 = vmatpush1.bf16.msra.mxu0 0
  %213 = vmatprep.subr.bf16.mxu0 0
  %214 = vmatpush1.bf16.msra.mxu0 0
  %215 = vmatprep.subr.bf16.mxu0 0
  %216 = vmatpush1.bf16.msra.mxu0 0
  %217 = vmatprep.subr.bf16.mxu0 0
  %218 = vmatpush1.bf16.msra.mxu0 0
  %219 = vmatprep.subr.bf16.mxu0 0
  %220 = vmatpush1.bf16.msra.mxu0 0
  %221 = vmatprep.subr.bf16.mxu0 0
  %222 = vmatpush1.bf16.msra.mxu0 0
  %223 = vmatprep.subr.bf16.mxu0 0
  %224 = vmatpush1.bf16.msra.mxu0 0
  %225 = vmatprep.subr.bf16.mxu0 0
  %226 = vmatpush1.bf16.msra.mxu0 0
  %227 = vmatprep.subr.bf16.mxu0 0
  %228 = vmatpush1.bf16.msra.mxu0 0
  %229 = vmatprep.subr.bf16.mxu0 0
  %230 = vmatpush1.bf16.msra.mxu0 0
  %231 = vmatprep.subr.bf16.mxu0 0
  %232 = vmatpush1.bf16.msra.mxu0 0
  %233 = vmatprep.mubr.bf16.mxu0 0
  %234 = vmatmul.mubr.bf16.gmra.mrb[0].mxu0 %v123
  %v235 = vpop.f32.mrb[0].mxu0
  %v236 = vadd.f32 %v43, %v235
  %v237 = vpop.f32.mrb[0].mxu0
  %v238 = vpop.f32.mrb[0].mxu0
  %v239 = vadd.f32 %v43, %v238
  %v240 = vpop.f32.mrb[0].mxu0
  %241 = vmatprep.mubr.bf16.mxu0 0
  %242 = vmatmul.mubr.bf16.gmra.mrb[0].mxu0 %v126
  %v243 = vpop.f32.mrb[0].mxu0
  %v244 = vadd.f32 %v43, %v243
  %v245 = vpop.f32.mrb[0].mxu0
  %v246 = vpop.f32.mrb[0].mxu0
  %v247 = vadd.f32 %v43, %v246
  %v248 = vpop.f32.mrb[0].mxu0
  %249 = vmatprep.mubr.bf16.mxu0 0
  %250 = vmatmul.mubr.bf16.gmra.mrb[0].mxu0 %v129
  %v251 = vpop.f32.mrb[0].mxu0
  %v252 = vadd.f32 %v43, %v251
  %v253 = vpop.f32.mrb[0].mxu0
  %v254 = vpop.f32.mrb[0].mxu0
  %v255 = vadd.f32 %v43, %v254
  %v256 = vpop.f32.mrb[0].mxu0
  %257 = vmatprep.mubr.bf16.mxu0 0
  %258 = vmatmul.mubr.bf16.gmra.mrb[0].mxu0 %v132
  %v259 = vpop.f32.mrb[0].mxu0
  %v260 = vadd.f32 %v43, %v259
  %v261 = vpop.f32.mrb[0].mxu0
  %v262 = vpop.f32.mrb[0].mxu0
  %v263 = vadd.f32 %v43, %v262
  %v264 = vpop.f32.mrb[0].mxu0
  %265 = vmatprep.mubr.bf16.mxu0 0
  %266 = vmatmul.mubr.bf16.gmra.mrb[0].mxu0 %v135
  %v267 = vpop.f32.mrb[0].mxu0
  %v268 = vadd.f32 %v43, %v267
  %v269 = vpop.f32.mrb[0].mxu0
  %v270 = vpop.f32.mrb[0].mxu0
  %v271 = vadd.f32 %v43, %v270
  %v272 = vpop.f32.mrb[0].mxu0
  %273 = vmatprep.mubr.bf16.mxu0 0
  %274 = vmatmul.mubr.bf16.gmra.mrb[0].mxu0 %v138
  %v275 = vpop.f32.mrb[0].mxu0
  %v276 = vadd.f32 %v43, %v275
  %v277 = vpop.f32.mrb[0].mxu0
  %v278 = vpop.f32.mrb[0].mxu0
  %v279 = vadd.f32 %v43, %v278
  %v280 = vpop.f32.mrb[0].mxu0
  %281 = vmatprep.mubr.bf16.mxu0 0
  %282 = vmatmul.mubr.bf16.gmra.mrb[0].mxu0 %v141
  %v283 = vpop.f32.mrb[0].mxu0
  %v284 = vadd.f32 %v43, %v283
  %v285 = vpop.f32.mrb[0].mxu0
  %v286 = vpop.f32.mrb[0].mxu0
  %v287 = vadd.f32 %v43, %v286
  %v288 = vpop.f32.mrb[0].mxu0
  %289 = vmatprep.mubr.bf16.mxu0 0
  %290 = vmatmul.mubr.bf16.gmra.mrb[0].mxu0 %v144
  %v291 = vpop.f32.mrb[0].mxu0
  %v292 = vadd.f32 %v43, %v291
  %v293 = vpop.f32.mrb[0].mxu0
  %v294 = vpop.f32.mrb[0].mxu0
  %v295 = vadd.f32 %v43, %v294
  %v296 = vpop.f32.mrb[0].mxu0
  %297 = vmatprep.mubr.bf16.mxu0 0
  %298 = vmatmul.mubr.bf16.gmra.mrb[0].mxu0 %v147
  %v299 = vpop.f32.mrb[0].mxu0
  %v300 = vadd.f32 %v43, %v299
  %v301 = vpop.f32.mrb[0].mxu0
  %v302 = vpop.f32.mrb[0].mxu0
  %v303 = vadd.f32 %v43, %v302
  %v304 = vpop.f32.mrb[0].mxu0
  %305 = vmatprep.mubr.bf16.mxu0 0
  %306 = vmatmul.mubr.bf16.gmra.mrb[0].mxu0 %v150
  %v307 = vpop.f32.mrb[0].mxu0
  %v308 = vadd.f32 %v43, %v307
  %v309 = vpop.f32.mrb[0].mxu0
  %v310 = vpop.f32.mrb[0].mxu0
  %v311 = vadd.f32 %v43, %v310
  %v312 = vpop.f32.mrb[0].mxu0
  %313 = vmatprep.mubr.bf16.mxu0 0
  %314 = vmatmul.mubr.bf16.gmra.mrb[0].mxu0 %v153
  %v315 = vpop.f32.mrb[0].mxu0
  %v316 = vadd.f32 %v43, %v315
  %v317 = vpop.f32.mrb[0].mxu0
  %v318 = vpop.f32.mrb[0].mxu0
  %v319 = vadd.f32 %v43, %v318
  %v320 = vpop.f32.mrb[0].mxu0
  %321 = vmatprep.mubr.bf16.mxu0 0
  %322 = vmatmul.mubr.bf16.gmra.mrb[0].mxu0 %v156
  %v323 = vpop.f32.mrb[0].mxu0
  %v324 = vadd.f32 %v43, %v323
  %v325 = vpop.f32.mrb[0].mxu0
  %v326 = vpop.f32.mrb[0].mxu0
  %v327 = vadd.f32 %v43, %v326
  %v328 = vpop.f32.mrb[0].mxu0
  %329 = vmatprep.mubr.bf16.mxu0 0
  %330 = vmatmul.mubr.bf16.gmra.mrb[0].mxu0 %v159
  %v331 = vpop.f32.mrb[0].mxu0
  %v332 = vadd.f32 %v43, %v331
  %v333 = vpop.f32.mrb[0].mxu0
  %v334 = vpop.f32.mrb[0].mxu0
  %v335 = vadd.f32 %v43, %v334
  %v336 = vpop.f32.mrb[0].mxu0
  %337 = vmatprep.mubr.bf16.mxu0 0
  %338 = vmatmul.mubr.bf16.gmra.mrb[0].mxu0 %v162
  %v339 = vpop.f32.mrb[0].mxu0
  %v340 = vadd.f32 %v43, %v339
  %v341 = vpop.f32.mrb[0].mxu0
  %v342 = vpop.f32.mrb[0].mxu0
  %v343 = vadd.f32 %v43, %v342
  %v344 = vpop.f32.mrb[0].mxu0
  %345 = vmatprep.mubr.bf16.mxu0 0
  %346 = vmatmul.mubr.bf16.gmra.mrb[0].mxu0 %v165
  %v347 = vpop.f32.mrb[0].mxu0
  %v348 = vadd.f32 %v43, %v347
  %v349 = vpop.f32.mrb[0].mxu0
  %v350 = vpop.f32.mrb[0].mxu0
  %v351 = vadd.f32 %v43, %v350
  %v352 = vpop.f32.mrb[0].mxu0
  %353 = vmatprep.mubr.bf16.mxu0 0
  %354 = vmatmul.mubr.bf16.gmra.mrb[0].mxu0 %v168
  %v355 = vpop.f32.mrb[0].mxu0
  %v356 = vadd.f32 %v43, %v355
  %v357 = vpop.f32.mrb[0].mxu0
  %v358 = vpop.f32.mrb[0].mxu0
  %v359 = vadd.f32 %v43, %v358
  %v360 = vpop.f32.mrb[0].mxu0
  %361 = vmatprep.mubr.bf16.mxu0 0
  %362 = vmatmul.mubr.bf16.gmra.mrb[0].mxu0 %v171
  %v363 = vpop.f32.mrb[0].mxu0
  %v364 = vadd.f32 %v43, %v363
  %v365 = vpop.f32.mrb[0].mxu0
  %v366 = vpop.f32.mrb[0].mxu0
  %v367 = vadd.f32 %v43, %v366
  %v368 = vpop.f32.mrb[0].mxu0
  %369 = vmatprep.mubr.bf16.mxu0 0
  %370 = vmatmul.mubr.bf16.gmra.mrb[0].mxu0 %v174
  %v371 = vpop.f32.mrb[0].mxu0
  %v372 = vadd.f32 %v43, %v371
  %v373 = vpop.f32.mrb[0].mxu0
  %v374 = vpop.f32.mrb[0].mxu0
  %v375 = vadd.f32 %v43, %v374
  %v376 = vpop.f32.mrb[0].mxu0
  %377 = vmatprep.mubr.bf16.mxu0 0
  %378 = vmatmul.mubr.bf16.gmra.mrb[0].mxu0 %v177
  %v379 = vpop.f32.mrb[0].mxu0
  %v380 = vadd.f32 %v43, %v379
  %v381 = vpop.f32.mrb[0].mxu0
  %v382 = vpop.f32.mrb[0].mxu0
  %v383 = vadd.f32 %v43, %v382
  %v384 = vpop.f32.mrb[0].mxu0
  %385 = vmatprep.mubr.bf16.mxu0 0
  %386 = vmatmul.mubr.bf16.gmra.mrb[0].mxu0 %v180
  %v387 = vpop.f32.mrb[0].mxu0
  %v388 = vadd.f32 %v43, %v387
  %v389 = vpop.f32.mrb[0].mxu0
  %v390 = vpop.f32.mrb[0].mxu0
  %v391 = vadd.f32 %v43, %v390
  %v392 = vpop.f32.mrb[0].mxu0
  %393 = vmatprep.mubr.bf16.mxu0 0
  %394 = vmatmul.mubr.bf16.gmra.mrb[0].mxu0 %v183
  %v395 = vpop.f32.mrb[0].mxu0
  %v396 = vadd.f32 %v43, %v395
  %v397 = vpop.f32.mrb[0].mxu0
  %v398 = vpop.f32.mrb[0].mxu0
  %v399 = vadd.f32 %v43, %v398
  %v400 = vpop.f32.mrb[0].mxu0
  %401 = vmatprep.mubr.bf16.mxu0 0
  %402 = vmatmul.mubr.bf16.gmra.mrb[0].mxu0 %v186
  %v403 = vpop.f32.mrb[0].mxu0
  %v404 = vadd.f32 %v43, %v403
  %v405 = vpop.f32.mrb[0].mxu0
  %v406 = vpop.f32.mrb[0].mxu0
  %v407 = vadd.f32 %v43, %v406
  %v408 = vpop.f32.mrb[0].mxu0
  %409 = vmatprep.mubr.bf16.mxu0 0
  %410 = vmatmul.mubr.bf16.gmra.mrb[0].mxu0 %v189
  %v411 = vpop.f32.mrb[0].mxu0
  %v412 = vadd.f32 %v43, %v411
  %v413 = vpop.f32.mrb[0].mxu0
  %v414 = vpop.f32.mrb[0].mxu0
  %v415 = vadd.f32 %v43, %v414
  %v416 = vpop.f32.mrb[0].mxu0
  %417 = vmatprep.mubr.bf16.mxu0 0
  %418 = vmatmul.mubr.bf16.gmra.mrb[0].mxu0 %v192
  %v419 = vpop.f32.mrb[0].mxu0
  %v420 = vadd.f32 %v43, %v419
  %v421 = vpop.f32.mrb[0].mxu0
  %v422 = vpop.f32.mrb[0].mxu0
  %v423 = vadd.f32 %v43, %v422
  %v424 = vpop.f32.mrb[0].mxu0
  %425 = vdwg.mxu0
  %v426 = vmax.f32 %v236, 0.0
  %v427 = vmax.f32 %v239, 0.0
  %v428 = vmax.f32 %v244, 0.0
  %v429 = vmax.f32 %v247, 0.0
  %v430 = vmax.f32 %v252, 0.0
  %v431 = vmax.f32 %v255, 0.0
  %v432 = vmax.f32 %v260, 0.0
  %v433 = vmax.f32 %v263, 0.0
  %v434 = vmax.f32 %v268, 0.0
  %v435 = vmax.f32 %v271, 0.0
  %v436 = vmax.f32 %v276, 0.0
  %v437 = vmax.f32 %v279, 0.0
  %v438 = vmax.f32 %v284, 0.0
  %v439 = vmax.f32 %v287, 0.0
  %v440 = vmax.f32 %v292, 0.0
  %v441 = vmax.f32 %v295, 0.0
  %v442 = vmax.f32 %v300, 0.0
  %v443 = vmax.f32 %v303, 0.0
  %v444 = vmax.f32 %v308, 0.0
  %v445 = vmax.f32 %v311, 0.0
  %v446 = vmax.f32 %v316, 0.0
  %v447 = vmax.f32 %v319, 0.0
  %v448 = vmax.f32 %v324, 0.0
  %v449 = vmax.f32 %v327, 0.0
  %v450 = vmax.f32 %v332, 0.0
  %v451 = vmax.f32 %v335, 0.0
  %v452 = vmax.f32 %v340, 0.0
  %v453 = vmax.f32 %v343, 0.0
  %v454 = vmax.f32 %v348, 0.0
  %v455 = vmax.f32 %v351, 0.0
  %v456 = vmax.f32 %v356, 0.0
  %v457 = vmax.f32 %v359, 0.0
  %v458 = vmax.f32 %v364, 0.0
  %v459 = vmax.f32 %v367, 0.0
  %v460 = vmax.f32 %v372, 0.0
  %v461 = vmax.f32 %v375, 0.0
  %v462 = vmax.f32 %v380, 0.0
  %v463 = vmax.f32 %v383, 0.0
  %v464 = vmax.f32 %v388, 0.0
  %v465 = vmax.f32 %v391, 0.0
  %v466 = vmax.f32 %v396, 0.0
  %v467 = vmax.f32 %v399, 0.0
  %v468 = vmax.f32 %v404, 0.0
  %v469 = vmax.f32 %v407, 0.0
  %v470 = vmax.f32 %v412, 0.0
  %v471 = vmax.f32 %v415, 0.0
  %v472 = vmax.f32 %v420, 0.0
  %v473 = vmax.f32 %v423, 0.0
  %v474 = vld [vmem:[%s1] sm:$0x3]
  %v475 = vpack.c.bf16 %v474, %v474
  %v477 = vlaneseq
  %v478 = vshrl.u32 %v477, 7
  %v479 = vsub.s32 0, %v478
  %v480 = vrot.slane %v47, %v479
  %v481 = vlaneseq
  %v482 = vshrl.u32 %v481, 7
  %v483 = vsub.s32 1, %v482
  %v484 = vrot.slane %v47, %v483
  %v485 = vlaneseq
  %v486 = vshrl.u32 %v485, 7
  %v487 = vsub.s32 2, %v486
  %v488 = vrot.slane %v47, %v487
  %v489 = vlaneseq
  %v490 = vshrl.u32 %v489, 7
  %v491 = vsub.s32 3, %v490
  %v492 = vrot.slane %v47, %v491
  %v493 = vlaneseq
  %v494 = vshrl.u32 %v493, 7
  %v495 = vsub.s32 4, %v494
  %v496 = vrot.slane %v47, %v495
  %v497 = vlaneseq
  %v498 = vshrl.u32 %v497, 7
  %v499 = vsub.s32 5, %v498
  %v500 = vrot.slane %v47, %v499
  %v501 = vlaneseq
  %v502 = vshrl.u32 %v501, 7
  %v503 = vsub.s32 6, %v502
  %v504 = vrot.slane %v47, %v503
  %v505 = vlaneseq
  %v506 = vshrl.u32 %v505, 7
  %v507 = vsub.s32 7, %v506
  %v508 = vrot.slane %v47, %v507
  %v525 = vunpack.c.l.b16 %v19
  %v526 = vunpack.c.h.b16 %v19
  %v527 = vunpack.c.l.b16 %v20
  %v528 = vunpack.c.h.b16 %v20
  %v529 = vunpack.c.l.b16 %v21
  %v530 = vunpack.c.h.b16 %v21
  %v531 = vunpack.c.l.b16 %v22
  %v532 = vunpack.c.h.b16 %v22
  %v533 = vunpack.c.l.b16 %v23
  %v534 = vunpack.c.h.b16 %v23
  %v535 = vunpack.c.l.b16 %v24
  %v536 = vunpack.c.h.b16 %v24
  %v537 = vunpack.c.l.b16 %v25
  %v538 = vunpack.c.h.b16 %v25
  %v539 = vunpack.c.l.b16 %v26
  %v540 = vunpack.c.h.b16 %v26
  %v541 = vpack.c.b16 %v533, %v525
  %v542 = vpack.c.b16 %v534, %v526
  %v543 = vpack.c.b16 %v535, %v527
  %v544 = vpack.c.b16 %v536, %v528
  %v545 = vpack.c.b16 %v537, %v529
  %v546 = vpack.c.b16 %v538, %v530
  %v547 = vpack.c.b16 %v539, %v531
  %v548 = vpack.c.b16 %v540, %v532
  %vm557 = vcmask 130048
  %v559 = vsel %vm557, %v475, 0
  %561 = vmatprep.subr.bf16.mxu0 %v542
  %562 = vmatpush1.bf16.msra.mxu0 %v541
  %563 = vmatprep.subr.bf16.mxu0 0
  %564 = vmatpush1.bf16.msra.mxu0 0
  %565 = vmatprep.subr.bf16.mxu0 0
  %566 = vmatpush1.bf16.msra.mxu0 0
  %567 = vmatprep.subr.bf16.mxu0 0
  %568 = vmatpush1.bf16.msra.mxu0 0
  %569 = vmatprep.subr.bf16.mxu0 0
  %570 = vmatpush1.bf16.msra.mxu0 0
  %571 = vmatprep.subr.bf16.mxu0 0
  %572 = vmatpush1.bf16.msra.mxu0 0
  %573 = vmatprep.subr.bf16.mxu0 0
  %574 = vmatpush1.bf16.msra.mxu0 0
  %575 = vmatprep.subr.bf16.mxu0 0
  %576 = vmatpush1.bf16.msra.mxu0 0
  %577 = vmatprep.subr.bf16.mxu0 0
  %578 = vmatpush1.bf16.msra.mxu0 0
  %579 = vmatprep.subr.bf16.mxu0 0
  %580 = vmatpush1.bf16.msra.mxu0 0
  %581 = vmatprep.subr.bf16.mxu0 0
  %582 = vmatpush1.bf16.msra.mxu0 0
  %583 = vmatprep.subr.bf16.mxu0 0
  %584 = vmatpush1.bf16.msra.mxu0 0
  %585 = vmatprep.subr.bf16.mxu0 0
  %586 = vmatpush1.bf16.msra.mxu0 0
  %587 = vmatprep.subr.bf16.mxu0 0
  %588 = vmatpush1.bf16.msra.mxu0 0
  %589 = vmatprep.subr.bf16.mxu0 0
  %590 = vmatpush1.bf16.msra.mxu0 0
  %591 = vmatprep.subr.bf16.mxu0 0
  %592 = vmatpush1.bf16.msra.mxu0 0
  %593 = vmatprep.mubr.bf16.mxu0 0
  %594 = vmatmul.mubr.bf16.gmra.mrb[0].mxu0 %v559
  %v595 = vpop.f32.mrb[0].mxu0
  %v596 = vadd.f32 %v480, %v595
  %v597 = vpop.f32.mrb[0].mxu0
  %v598 = vadd.f32 %v484, %v597
  %v599 = vpop.f32.mrb[0].mxu0
  %v600 = vpop.f32.mrb[0].mxu0
  %601 = vdwg.mxu0
  %602 = vmatprep.subr.bf16.mxu0 %v544
  %603 = vmatpush1.bf16.msra.mxu0 %v543
  %604 = vmatprep.subr.bf16.mxu0 0
  %605 = vmatpush1.bf16.msra.mxu0 0
  %606 = vmatprep.subr.bf16.mxu0 0
  %607 = vmatpush1.bf16.msra.mxu0 0
  %608 = vmatprep.subr.bf16.mxu0 0
  %609 = vmatpush1.bf16.msra.mxu0 0
  %610 = vmatprep.subr.bf16.mxu0 0
  %611 = vmatpush1.bf16.msra.mxu0 0
  %612 = vmatprep.subr.bf16.mxu0 0
  %613 = vmatpush1.bf16.msra.mxu0 0
  %614 = vmatprep.subr.bf16.mxu0 0
  %615 = vmatpush1.bf16.msra.mxu0 0
  %616 = vmatprep.subr.bf16.mxu0 0
  %617 = vmatpush1.bf16.msra.mxu0 0
  %618 = vmatprep.subr.bf16.mxu0 0
  %619 = vmatpush1.bf16.msra.mxu0 0
  %620 = vmatprep.subr.bf16.mxu0 0
  %621 = vmatpush1.bf16.msra.mxu0 0
  %622 = vmatprep.subr.bf16.mxu0 0
  %623 = vmatpush1.bf16.msra.mxu0 0
  %624 = vmatprep.subr.bf16.mxu0 0
  %625 = vmatpush1.bf16.msra.mxu0 0
  %626 = vmatprep.subr.bf16.mxu0 0
  %627 = vmatpush1.bf16.msra.mxu0 0
  %628 = vmatprep.subr.bf16.mxu0 0
  %629 = vmatpush1.bf16.msra.mxu0 0
  %630 = vmatprep.subr.bf16.mxu0 0
  %631 = vmatpush1.bf16.msra.mxu0 0
  %632 = vmatprep.subr.bf16.mxu0 0
  %633 = vmatpush1.bf16.msra.mxu0 0
  %634 = vmatprep.mubr.bf16.mxu0 0
  %635 = vmatmul.mubr.bf16.gmra.mrb[0].mxu0 %v559
  %v636 = vpop.f32.mrb[0].mxu0
  %v637 = vadd.f32 %v488, %v636
  %v638 = vpop.f32.mrb[0].mxu0
  %v639 = vadd.f32 %v492, %v638
  %v640 = vpop.f32.mrb[0].mxu0
  %v641 = vpop.f32.mrb[0].mxu0
  %642 = vdwg.mxu0
  %643 = vmatprep.subr.bf16.mxu0 %v546
  %644 = vmatpush1.bf16.msra.mxu0 %v545
  %645 = vmatprep.subr.bf16.mxu0 0
  %646 = vmatpush1.bf16.msra.mxu0 0
  %647 = vmatprep.subr.bf16.mxu0 0
  %648 = vmatpush1.bf16.msra.mxu0 0
  %649 = vmatprep.subr.bf16.mxu0 0
  %650 = vmatpush1.bf16.msra.mxu0 0
  %651 = vmatprep.subr.bf16.mxu0 0
  %652 = vmatpush1.bf16.msra.mxu0 0
  %653 = vmatprep.subr.bf16.mxu0 0
  %654 = vmatpush1.bf16.msra.mxu0 0
  %655 = vmatprep.subr.bf16.mxu0 0
  %656 = vmatpush1.bf16.msra.mxu0 0
  %657 = vmatprep.subr.bf16.mxu0 0
  %658 = vmatpush1.bf16.msra.mxu0 0
  %659 = vmatprep.subr.bf16.mxu0 0
  %660 = vmatpush1.bf16.msra.mxu0 0
  %661 = vmatprep.subr.bf16.mxu0 0
  %662 = vmatpush1.bf16.msra.mxu0 0
  %663 = vmatprep.subr.bf16.mxu0 0
  %664 = vmatpush1.bf16.msra.mxu0 0
  %665 = vmatprep.subr.bf16.mxu0 0
  %666 = vmatpush1.bf16.msra.mxu0 0
  %667 = vmatprep.subr.bf16.mxu0 0
  %668 = vmatpush1.bf16.msra.mxu0 0
  %669 = vmatprep.subr.bf16.mxu0 0
  %670 = vmatpush1.bf16.msra.mxu0 0
  %671 = vmatprep.subr.bf16.mxu0 0
  %672 = vmatpush1.bf16.msra.mxu0 0
  %673 = vmatprep.subr.bf16.mxu0 0
  %674 = vmatpush1.bf16.msra.mxu0 0
  %675 = vmatprep.mubr.bf16.mxu0 0
  %676 = vmatmul.mubr.bf16.gmra.mrb[0].mxu0 %v559
  %v677 = vpop.f32.mrb[0].mxu0
  %v678 = vadd.f32 %v496, %v677
  %v679 = vpop.f32.mrb[0].mxu0
  %v680 = vadd.f32 %v500, %v679
  %v681 = vpop.f32.mrb[0].mxu0
  %v682 = vpop.f32.mrb[0].mxu0
  %683 = vdwg.mxu0
  %684 = vmatprep.subr.bf16.mxu0 %v548
  %685 = vmatpush1.bf16.msra.mxu0 %v547
  %686 = vmatprep.subr.bf16.mxu0 0
  %687 = vmatpush1.bf16.msra.mxu0 0
  %688 = vmatprep.subr.bf16.mxu0 0
  %689 = vmatpush1.bf16.msra.mxu0 0
  %690 = vmatprep.subr.bf16.mxu0 0
  %691 = vmatpush1.bf16.msra.mxu0 0
  %692 = vmatprep.subr.bf16.mxu0 0
  %693 = vmatpush1.bf16.msra.mxu0 0
  %694 = vmatprep.subr.bf16.mxu0 0
  %695 = vmatpush1.bf16.msra.mxu0 0
  %696 = vmatprep.subr.bf16.mxu0 0
  %697 = vmatpush1.bf16.msra.mxu0 0
  %698 = vmatprep.subr.bf16.mxu0 0
  %699 = vmatpush1.bf16.msra.mxu0 0
  %700 = vmatprep.subr.bf16.mxu0 0
  %701 = vmatpush1.bf16.msra.mxu0 0
  %702 = vmatprep.subr.bf16.mxu0 0
  %703 = vmatpush1.bf16.msra.mxu0 0
  %704 = vmatprep.subr.bf16.mxu0 0
  %705 = vmatpush1.bf16.msra.mxu0 0
  %706 = vmatprep.subr.bf16.mxu0 0
  %707 = vmatpush1.bf16.msra.mxu0 0
  %708 = vmatprep.subr.bf16.mxu0 0
  %709 = vmatpush1.bf16.msra.mxu0 0
  %710 = vmatprep.subr.bf16.mxu0 0
  %711 = vmatpush1.bf16.msra.mxu0 0
  %712 = vmatprep.subr.bf16.mxu0 0
  %713 = vmatpush1.bf16.msra.mxu0 0
  %714 = vmatprep.subr.bf16.mxu0 0
  %715 = vmatpush1.bf16.msra.mxu0 0
  %716 = vmatprep.mubr.bf16.mxu0 0
  %717 = vmatmul.mubr.bf16.gmra.mrb[0].mxu0 %v559
  %v718 = vpop.f32.mrb[0].mxu0
  %v719 = vadd.f32 %v504, %v718
  %v720 = vpop.f32.mrb[0].mxu0
  %v721 = vadd.f32 %v508, %v720
  %v722 = vpop.f32.mrb[0].mxu0
  %v723 = vpop.f32.mrb[0].mxu0
  %724 = vdwg.mxu0
  %v727 = vunpack.c.l.s4 1966171168
  %v728 = vunpack.c.0.s8 %v727
  %v729 = vlaneseq
  %v730 = vshrl.u32 %v729, 7
  %v731 = vsub.s32 %v728, %v730
  %v732 = vrot.slane %v596, %v731
  %v733 = vcombine.high %v732, %v732
  %v735 = vunpack.c.l.s4 1966171168
  %v736 = vunpack.c.0.s8 %v735
  %v737 = vlaneseq
  %v738 = vshrl.u32 %v737, 7
  %v739 = vsub.s32 %v736, %v738
  %v740 = vrot.slane %v732, %v739
  %v742 = vunpack.c.l.s4 1966171168
  %v743 = vunpack.c.0.s8 %v742
  %v744 = vlaneseq
  %v745 = vshrl.u32 %v744, 7
  %v746 = vsub.s32 %v743, %v745
  %v747 = vrot.slane %v733, %v746
  %v748 = vlaneseq
  %v749 = vshrl.u32 %v748, 7
  %v750 = vsub.s32 0, %v749
  %v751 = vrot.slane %v740, %v750
  %v752 = vlaneseq
  %v753 = vshrl.u32 %v752, 7
  %v754 = vsub.s32 0, %v753
  %v755 = vrot.slane %v747, %v754
  %v758 = vmul.f32 %v751, %v426
  %v759 = vmul.f32 %v751, %v427
  %v760 = vmul.f32 %v751, %v428
  %v761 = vmul.f32 %v751, %v429
  %v762 = vmul.f32 %v751, %v430
  %v763 = vmul.f32 %v751, %v431
  %v764 = vmul.f32 %v751, %v432
  %v765 = vmul.f32 %v751, %v433
  %v766 = vmul.f32 %v755, %v434
  %v767 = vmul.f32 %v755, %v435
  %v768 = vmul.f32 %v755, %v436
  %v769 = vmul.f32 %v755, %v437
  %v770 = vmul.f32 %v755, %v438
  %v771 = vmul.f32 %v755, %v439
  %v772 = vmul.f32 %v755, %v440
  %v773 = vmul.f32 %v755, %v441
  %v776 = vunpack.c.l.s4 1966171168
  %v777 = vunpack.c.0.s8 %v776
  %v778 = vlaneseq
  %v779 = vshrl.u32 %v778, 7
  %v780 = vsub.s32 %v777, %v779
  %v781 = vrot.slane %v678, %v780
  %v782 = vcombine.high %v781, %v781
  %v784 = vunpack.c.l.s4 1966171168
  %v785 = vunpack.c.0.s8 %v784
  %v786 = vlaneseq
  %v787 = vshrl.u32 %v786, 7
  %v788 = vsub.s32 %v785, %v787
  %v789 = vrot.slane %v781, %v788
  %v791 = vunpack.c.l.s4 1966171168
  %v792 = vunpack.c.0.s8 %v791
  %v793 = vlaneseq
  %v794 = vshrl.u32 %v793, 7
  %v795 = vsub.s32 %v792, %v794
  %v796 = vrot.slane %v782, %v795
  %v797 = vlaneseq
  %v798 = vshrl.u32 %v797, 7
  %v799 = vsub.s32 0, %v798
  %v800 = vrot.slane %v789, %v799
  %v801 = vlaneseq
  %v802 = vshrl.u32 %v801, 7
  %v803 = vsub.s32 0, %v802
  %v804 = vrot.slane %v796, %v803
  %v807 = vadd.f32 %v758, %v800
  %v808 = vadd.f32 %v759, %v800
  %v809 = vadd.f32 %v760, %v800
  %v810 = vadd.f32 %v761, %v800
  %v811 = vadd.f32 %v762, %v800
  %v812 = vadd.f32 %v763, %v800
  %v813 = vadd.f32 %v764, %v800
  %v814 = vadd.f32 %v765, %v800
  %v815 = vadd.f32 %v766, %v804
  %v816 = vadd.f32 %v767, %v804
  %v817 = vadd.f32 %v768, %v804
  %v818 = vadd.f32 %v769, %v804
  %v819 = vadd.f32 %v770, %v804
  %v820 = vadd.f32 %v771, %v804
  %v821 = vadd.f32 %v772, %v804
  %v822 = vadd.f32 %v773, %v804
  %v823 = vmax.f32 %v807, 0.0
  %v824 = vmax.f32 %v808, 0.0
  %v825 = vmax.f32 %v809, 0.0
  %v826 = vmax.f32 %v810, 0.0
  %v827 = vmax.f32 %v811, 0.0
  %v828 = vmax.f32 %v812, 0.0
  %v829 = vmax.f32 %v813, 0.0
  %v830 = vmax.f32 %v814, 0.0
  %v831 = vmax.f32 %v815, 0.0
  %v832 = vmax.f32 %v816, 0.0
  %v833 = vmax.f32 %v817, 0.0
  %v834 = vmax.f32 %v818, 0.0
  %v835 = vmax.f32 %v819, 0.0
  %v836 = vmax.f32 %v820, 0.0
  %v837 = vmax.f32 %v821, 0.0
  %v838 = vmax.f32 %v822, 0.0
  %v841 = vunpack.c.l.s4 1966171168
  %v842 = vunpack.c.0.s8 %v841
  %v843 = vlaneseq
  %v844 = vshrl.u32 %v843, 7
  %v845 = vsub.s32 %v842, %v844
  %v846 = vrot.slane %v598, %v845
  %v847 = vcombine.high %v846, %v846
  %v849 = vunpack.c.l.s4 1966171168
  %v850 = vunpack.c.0.s8 %v849
  %v851 = vlaneseq
  %v852 = vshrl.u32 %v851, 7
  %v853 = vsub.s32 %v850, %v852
  %v854 = vrot.slane %v846, %v853
  %v856 = vunpack.c.l.s4 1966171168
  %v857 = vunpack.c.0.s8 %v856
  %v858 = vlaneseq
  %v859 = vshrl.u32 %v858, 7
  %v860 = vsub.s32 %v857, %v859
  %v861 = vrot.slane %v847, %v860
  %v862 = vlaneseq
  %v863 = vshrl.u32 %v862, 7
  %v864 = vsub.s32 0, %v863
  %v865 = vrot.slane %v854, %v864
  %v866 = vlaneseq
  %v867 = vshrl.u32 %v866, 7
  %v868 = vsub.s32 0, %v867
  %v869 = vrot.slane %v861, %v868
  %v872 = vmul.f32 %v865, %v823
  %v873 = vmul.f32 %v865, %v824
  %v874 = vmul.f32 %v865, %v825
  %v875 = vmul.f32 %v865, %v826
  %v876 = vmul.f32 %v865, %v827
  %v877 = vmul.f32 %v865, %v828
  %v878 = vmul.f32 %v865, %v829
  %v879 = vmul.f32 %v865, %v830
  %v880 = vmul.f32 %v869, %v831
  %v881 = vmul.f32 %v869, %v832
  %v882 = vmul.f32 %v869, %v833
  %v883 = vmul.f32 %v869, %v834
  %v884 = vmul.f32 %v869, %v835
  %v885 = vmul.f32 %v869, %v836
  %v886 = vmul.f32 %v869, %v837
  %v887 = vmul.f32 %v869, %v838
  %v890 = vunpack.c.l.s4 1966171168
  %v891 = vunpack.c.0.s8 %v890
  %v892 = vlaneseq
  %v893 = vshrl.u32 %v892, 7
  %v894 = vsub.s32 %v891, %v893
  %v895 = vrot.slane %v680, %v894
  %v896 = vcombine.high %v895, %v895
  %v898 = vunpack.c.l.s4 1966171168
  %v899 = vunpack.c.0.s8 %v898
  %v900 = vlaneseq
  %v901 = vshrl.u32 %v900, 7
  %v902 = vsub.s32 %v899, %v901
  %v903 = vrot.slane %v895, %v902
  %v905 = vunpack.c.l.s4 1966171168
  %v906 = vunpack.c.0.s8 %v905
  %v907 = vlaneseq
  %v908 = vshrl.u32 %v907, 7
  %v909 = vsub.s32 %v906, %v908
  %v910 = vrot.slane %v896, %v909
  %v911 = vlaneseq
  %v912 = vshrl.u32 %v911, 7
  %v913 = vsub.s32 0, %v912
  %v914 = vrot.slane %v903, %v913
  %v915 = vlaneseq
  %v916 = vshrl.u32 %v915, 7
  %v917 = vsub.s32 0, %v916
  %v918 = vrot.slane %v910, %v917
  %v921 = vadd.f32 %v872, %v914
  %v922 = vadd.f32 %v873, %v914
  %v923 = vadd.f32 %v874, %v914
  %v924 = vadd.f32 %v875, %v914
  %v925 = vadd.f32 %v876, %v914
  %v926 = vadd.f32 %v877, %v914
  %v927 = vadd.f32 %v878, %v914
  %v928 = vadd.f32 %v879, %v914
  %v929 = vadd.f32 %v880, %v918
  %v930 = vadd.f32 %v881, %v918
  %v931 = vadd.f32 %v882, %v918
  %v932 = vadd.f32 %v883, %v918
  %v933 = vadd.f32 %v884, %v918
  %v934 = vadd.f32 %v885, %v918
  %v935 = vadd.f32 %v886, %v918
  %v936 = vadd.f32 %v887, %v918
  %v937 = vmax.f32 %v921, 0.0
  %v938 = vmax.f32 %v922, 0.0
  %v939 = vmax.f32 %v923, 0.0
  %v940 = vmax.f32 %v924, 0.0
  %v941 = vmax.f32 %v925, 0.0
  %v942 = vmax.f32 %v926, 0.0
  %v943 = vmax.f32 %v927, 0.0
  %v944 = vmax.f32 %v928, 0.0
  %v945 = vmax.f32 %v929, 0.0
  %v946 = vmax.f32 %v930, 0.0
  %v947 = vmax.f32 %v931, 0.0
  %v948 = vmax.f32 %v932, 0.0
  %v949 = vmax.f32 %v933, 0.0
  %v950 = vmax.f32 %v934, 0.0
  %v951 = vmax.f32 %v935, 0.0
  %v952 = vmax.f32 %v936, 0.0
  %v955 = vunpack.c.l.s4 1966171168
  %v956 = vunpack.c.0.s8 %v955
  %v957 = vlaneseq
  %v958 = vshrl.u32 %v957, 7
  %v959 = vsub.s32 %v956, %v958
  %v960 = vrot.slane %v637, %v959
  %v961 = vcombine.high %v960, %v960
  %v963 = vunpack.c.l.s4 1966171168
  %v964 = vunpack.c.0.s8 %v963
  %v965 = vlaneseq
  %v966 = vshrl.u32 %v965, 7
  %v967 = vsub.s32 %v964, %v966
  %v968 = vrot.slane %v960, %v967
  %v970 = vunpack.c.l.s4 1966171168
  %v971 = vunpack.c.0.s8 %v970
  %v972 = vlaneseq
  %v973 = vshrl.u32 %v972, 7
  %v974 = vsub.s32 %v971, %v973
  %v975 = vrot.slane %v961, %v974
  %v976 = vlaneseq
  %v977 = vshrl.u32 %v976, 7
  %v978 = vsub.s32 0, %v977
  %v979 = vrot.slane %v968, %v978
  %v980 = vlaneseq
  %v981 = vshrl.u32 %v980, 7
  %v982 = vsub.s32 0, %v981
  %v983 = vrot.slane %v975, %v982
  %v986 = vmul.f32 %v979, %v937
  %v987 = vmul.f32 %v979, %v938
  %v988 = vmul.f32 %v979, %v939
  %v989 = vmul.f32 %v979, %v940
  %v990 = vmul.f32 %v979, %v941
  %v991 = vmul.f32 %v979, %v942
  %v992 = vmul.f32 %v979, %v943
  %v993 = vmul.f32 %v979, %v944
  %v994 = vmul.f32 %v983, %v945
  %v995 = vmul.f32 %v983, %v946
  %v996 = vmul.f32 %v983, %v947
  %v997 = vmul.f32 %v983, %v948
  %v998 = vmul.f32 %v983, %v949
  %v999 = vmul.f32 %v983, %v950
  %v1000 = vmul.f32 %v983, %v951
  %v1001 = vmul.f32 %v983, %v952
  %v1004 = vunpack.c.l.s4 1966171168
  %v1005 = vunpack.c.0.s8 %v1004
  %v1006 = vlaneseq
  %v1007 = vshrl.u32 %v1006, 7
  %v1008 = vsub.s32 %v1005, %v1007
  %v1009 = vrot.slane %v719, %v1008
  %v1010 = vcombine.high %v1009, %v1009
  %v1012 = vunpack.c.l.s4 1966171168
  %v1013 = vunpack.c.0.s8 %v1012
  %v1014 = vlaneseq
  %v1015 = vshrl.u32 %v1014, 7
  %v1016 = vsub.s32 %v1013, %v1015
  %v1017 = vrot.slane %v1009, %v1016
  %v1019 = vunpack.c.l.s4 1966171168
  %v1020 = vunpack.c.0.s8 %v1019
  %v1021 = vlaneseq
  %v1022 = vshrl.u32 %v1021, 7
  %v1023 = vsub.s32 %v1020, %v1022
  %v1024 = vrot.slane %v1010, %v1023
  %v1025 = vlaneseq
  %v1026 = vshrl.u32 %v1025, 7
  %v1027 = vsub.s32 0, %v1026
  %v1028 = vrot.slane %v1017, %v1027
  %v1029 = vlaneseq
  %v1030 = vshrl.u32 %v1029, 7
  %v1031 = vsub.s32 0, %v1030
  %v1032 = vrot.slane %v1024, %v1031
  %v1035 = vadd.f32 %v986, %v1028
  %v1036 = vadd.f32 %v987, %v1028
  %v1037 = vadd.f32 %v988, %v1028
  %v1038 = vadd.f32 %v989, %v1028
  %v1039 = vadd.f32 %v990, %v1028
  %v1040 = vadd.f32 %v991, %v1028
  %v1041 = vadd.f32 %v992, %v1028
  %v1042 = vadd.f32 %v993, %v1028
  %v1043 = vadd.f32 %v994, %v1032
  %v1044 = vadd.f32 %v995, %v1032
  %v1045 = vadd.f32 %v996, %v1032
  %v1046 = vadd.f32 %v997, %v1032
  %v1047 = vadd.f32 %v998, %v1032
  %v1048 = vadd.f32 %v999, %v1032
  %v1049 = vadd.f32 %v1000, %v1032
  %v1050 = vadd.f32 %v1001, %v1032
  %v1051 = vmax.f32 %v1035, 0.0
  %v1052 = vmax.f32 %v1036, 0.0
  %v1053 = vmax.f32 %v1037, 0.0
  %v1054 = vmax.f32 %v1038, 0.0
  %v1055 = vmax.f32 %v1039, 0.0
  %v1056 = vmax.f32 %v1040, 0.0
  %v1057 = vmax.f32 %v1041, 0.0
  %v1058 = vmax.f32 %v1042, 0.0
  %v1059 = vmax.f32 %v1043, 0.0
  %v1060 = vmax.f32 %v1044, 0.0
  %v1061 = vmax.f32 %v1045, 0.0
  %v1062 = vmax.f32 %v1046, 0.0
  %v1063 = vmax.f32 %v1047, 0.0
  %v1064 = vmax.f32 %v1048, 0.0
  %v1065 = vmax.f32 %v1049, 0.0
  %v1066 = vmax.f32 %v1050, 0.0
  %v1069 = vunpack.c.l.s4 1966171168
  %v1070 = vunpack.c.0.s8 %v1069
  %v1071 = vlaneseq
  %v1072 = vshrl.u32 %v1071, 7
  %v1073 = vsub.s32 %v1070, %v1072
  %v1074 = vrot.slane %v639, %v1073
  %v1075 = vcombine.high %v1074, %v1074
  %v1077 = vunpack.c.l.s4 1966171168
  %v1078 = vunpack.c.0.s8 %v1077
  %v1079 = vlaneseq
  %v1080 = vshrl.u32 %v1079, 7
  %v1081 = vsub.s32 %v1078, %v1080
  %v1082 = vrot.slane %v1074, %v1081
  %v1084 = vunpack.c.l.s4 1966171168
  %v1085 = vunpack.c.0.s8 %v1084
  %v1086 = vlaneseq
  %v1087 = vshrl.u32 %v1086, 7
  %v1088 = vsub.s32 %v1085, %v1087
  %v1089 = vrot.slane %v1075, %v1088
  %v1090 = vlaneseq
  %v1091 = vshrl.u32 %v1090, 7
  %v1092 = vsub.s32 0, %v1091
  %v1093 = vrot.slane %v1082, %v1092
  %v1094 = vlaneseq
  %v1095 = vshrl.u32 %v1094, 7
  %v1096 = vsub.s32 0, %v1095
  %v1097 = vrot.slane %v1089, %v1096
  %v1100 = vmul.f32 %v1093, %v1051
  %v1101 = vmul.f32 %v1093, %v1052
  %v1102 = vmul.f32 %v1093, %v1053
  %v1103 = vmul.f32 %v1093, %v1054
  %v1104 = vmul.f32 %v1093, %v1055
  %v1105 = vmul.f32 %v1093, %v1056
  %v1106 = vmul.f32 %v1093, %v1057
  %v1107 = vmul.f32 %v1093, %v1058
  %v1108 = vmul.f32 %v1097, %v1059
  %v1109 = vmul.f32 %v1097, %v1060
  %v1110 = vmul.f32 %v1097, %v1061
  %v1111 = vmul.f32 %v1097, %v1062
  %v1112 = vmul.f32 %v1097, %v1063
  %v1113 = vmul.f32 %v1097, %v1064
  %v1114 = vmul.f32 %v1097, %v1065
  %v1115 = vmul.f32 %v1097, %v1066
  %v1118 = vunpack.c.l.s4 1966171168
  %v1119 = vunpack.c.0.s8 %v1118
  %v1120 = vlaneseq
  %v1121 = vshrl.u32 %v1120, 7
  %v1122 = vsub.s32 %v1119, %v1121
  %v1123 = vrot.slane %v721, %v1122
  %v1124 = vcombine.high %v1123, %v1123
  %v1126 = vunpack.c.l.s4 1966171168
  %v1127 = vunpack.c.0.s8 %v1126
  %v1128 = vlaneseq
  %v1129 = vshrl.u32 %v1128, 7
  %v1130 = vsub.s32 %v1127, %v1129
  %v1131 = vrot.slane %v1123, %v1130
  %v1133 = vunpack.c.l.s4 1966171168
  %v1134 = vunpack.c.0.s8 %v1133
  %v1135 = vlaneseq
  %v1136 = vshrl.u32 %v1135, 7
  %v1137 = vsub.s32 %v1134, %v1136
  %v1138 = vrot.slane %v1124, %v1137
  %v1139 = vlaneseq
  %v1140 = vshrl.u32 %v1139, 7
  %v1141 = vsub.s32 0, %v1140
  %v1142 = vrot.slane %v1131, %v1141
  %v1143 = vlaneseq
  %v1144 = vshrl.u32 %v1143, 7
  %v1145 = vsub.s32 0, %v1144
  %v1146 = vrot.slane %v1138, %v1145
  %v1149 = vadd.f32 %v1100, %v1142
  %v1150 = vadd.f32 %v1101, %v1142
  %v1151 = vadd.f32 %v1102, %v1142
  %v1152 = vadd.f32 %v1103, %v1142
  %v1153 = vadd.f32 %v1104, %v1142
  %v1154 = vadd.f32 %v1105, %v1142
  %v1155 = vadd.f32 %v1106, %v1142
  %v1156 = vadd.f32 %v1107, %v1142
  %v1157 = vadd.f32 %v1108, %v1146
  %v1158 = vadd.f32 %v1109, %v1146
  %v1159 = vadd.f32 %v1110, %v1146
  %v1160 = vadd.f32 %v1111, %v1146
  %v1161 = vadd.f32 %v1112, %v1146
  %v1162 = vadd.f32 %v1113, %v1146
  %v1163 = vadd.f32 %v1114, %v1146
  %v1164 = vadd.f32 %v1115, %v1146
  %v1165 = vmax.f32 %v1149, 0.0
  %v1166 = vmax.f32 %v1150, 0.0
  %v1167 = vmax.f32 %v1151, 0.0
  %v1168 = vmax.f32 %v1152, 0.0
  %v1169 = vmax.f32 %v1153, 0.0
  %v1170 = vmax.f32 %v1154, 0.0
  %v1171 = vmax.f32 %v1155, 0.0
  %v1172 = vmax.f32 %v1156, 0.0
  %v1173 = vmax.f32 %v1157, 0.0
  %v1174 = vmax.f32 %v1158, 0.0
  %v1175 = vmax.f32 %v1159, 0.0
  %v1176 = vmax.f32 %v1160, 0.0
  %v1177 = vmax.f32 %v1161, 0.0
  %v1178 = vmax.f32 %v1162, 0.0
  %v1179 = vmax.f32 %v1163, 0.0
  %v1180 = vmax.f32 %v1164, 0.0
  %v1181 = vmax.f32 %v1165, %v1166
  %v1182 = vmax.f32 %v1181, %v1167
  %v1183 = vmax.f32 %v1182, %v1168
  %v1184 = vmax.f32 %v1183, %v1169
  %v1185 = vmax.f32 %v1184, %v1170
  %v1186 = vmax.f32 %v1185, %v1171
  %v1187 = vmax.f32 %v1186, %v1172
  %v1188 = vrot.slane %v1187, 4
  %v1189 = vmax.f32 %v1187, %v1188
  %v1190 = vrot.slane %v1189, 2
  %v1191 = vmax.f32 %v1189, %v1190
  %v1192 = vrot.slane %v1191, 1
  %v1193 = vmax.f32 %v1191, %v1192
  %v1194 = vmax.f32 %v1173, %v1174
  %v1195 = vmax.f32 %v1194, %v1175
  %v1196 = vmax.f32 %v1195, %v1176
  %v1197 = vmax.f32 %v1196, %v1177
  %v1198 = vmax.f32 %v1197, %v1178
  %v1199 = vmax.f32 %v1198, %v1179
  %v1200 = vmax.f32 %v1199, %v1180
  %v1201 = vrot.slane %v1200, 4
  %v1202 = vmax.f32 %v1200, %v1201
  %v1203 = vrot.slane %v1202, 2
  %v1204 = vmax.f32 %v1202, %v1203
  %v1205 = vrot.slane %v1204, 1
  %v1206 = vmax.f32 %v1204, %v1205
  %v1207 = vmax.f32 %v442, %v443
  %v1208 = vmax.f32 %v1207, %v444
  %v1209 = vmax.f32 %v1208, %v445
  %v1210 = vmax.f32 %v1209, %v446
  %v1211 = vmax.f32 %v1210, %v447
  %v1212 = vmax.f32 %v1211, %v448
  %v1213 = vmax.f32 %v1212, %v449
  %v1214 = vrot.slane %v1213, 4
  %v1215 = vmax.f32 %v1213, %v1214
  %v1216 = vrot.slane %v1215, 2
  %v1217 = vmax.f32 %v1215, %v1216
  %v1218 = vrot.slane %v1217, 1
  %v1219 = vmax.f32 %v1217, %v1218
  %v1220 = vmax.f32 %v450, %v451
  %v1221 = vmax.f32 %v1220, %v452
  %v1222 = vmax.f32 %v1221, %v453
  %v1223 = vmax.f32 %v1222, %v454
  %v1224 = vmax.f32 %v1223, %v455
  %v1225 = vmax.f32 %v1224, %v456
  %v1226 = vmax.f32 %v1225, %v457
  %v1227 = vrot.slane %v1226, 4
  %v1228 = vmax.f32 %v1226, %v1227
  %v1229 = vrot.slane %v1228, 2
  %v1230 = vmax.f32 %v1228, %v1229
  %v1231 = vrot.slane %v1230, 1
  %v1232 = vmax.f32 %v1230, %v1231
  %v1233 = vmax.f32 %v458, %v459
  %v1234 = vmax.f32 %v1233, %v460
  %v1235 = vmax.f32 %v1234, %v461
  %v1236 = vmax.f32 %v1235, %v462
  %v1237 = vmax.f32 %v1236, %v463
  %v1238 = vmax.f32 %v1237, %v464
  %v1239 = vmax.f32 %v1238, %v465
  %v1240 = vrot.slane %v1239, 4
  %v1241 = vmax.f32 %v1239, %v1240
  %v1242 = vrot.slane %v1241, 2
  %v1243 = vmax.f32 %v1241, %v1242
  %v1244 = vrot.slane %v1243, 1
  %v1245 = vmax.f32 %v1243, %v1244
  %v1246 = vmax.f32 %v466, %v467
  %v1247 = vmax.f32 %v1246, %v468
  %v1248 = vmax.f32 %v1247, %v469
  %v1249 = vmax.f32 %v1248, %v470
  %v1250 = vmax.f32 %v1249, %v471
  %v1251 = vmax.f32 %v1250, %v472
  %v1252 = vmax.f32 %v1251, %v473
  %v1253 = vrot.slane %v1252, 4
  %v1254 = vmax.f32 %v1252, %v1253
  %v1255 = vrot.slane %v1254, 2
  %v1256 = vmax.f32 %v1254, %v1255
  %v1257 = vrot.slane %v1256, 1
  %v1258 = vmax.f32 %v1256, %v1257
  %v1259 = vpack.c.bf16 %v1193, %v1193
  %v1260 = vpack.c.bf16 %v1206, %v1206
  %v1261 = vpack.c.bf16 %v1219, %v1219
  %v1262 = vpack.c.bf16 %v1232, %v1232
  %v1263 = vpack.c.bf16 %v1245, %v1245
  %v1264 = vpack.c.bf16 %v1258, %v1258
  %v1271 = vunpack.c.l.b16 %v1259
  %v1272 = vunpack.c.l.b16 %v1260
  %v1273 = vunpack.c.l.b16 %v1261
  %v1274 = vunpack.c.l.b16 %v1262
  %v1275 = vunpack.c.l.b16 %v1263
  %v1276 = vunpack.c.l.b16 %v1264
  %vm1277 = vcmask 1041409
  %v1278 = vsel %vm1277, %v1272, %v1271
  %vm1279 = vcmask 1042434
  %v1280 = vsel %vm1279, %v1273, %v1278
  %vm1281 = vcmask 1043459
  %v1282 = vsel %vm1281, %v1274, %v1280
  %vm1283 = vcmask 1044484
  %v1284 = vsel %vm1283, %v1275, %v1282
  %vm1285 = vcmask 1045509
  %v1286 = vsel %vm1285, %v1276, %v1284
  %v1287 = vpack.c.b16 %v1286, %v1286
  %v1305 = vunpack.c.l.b16 %v27
  %v1306 = vunpack.c.l.b16 %v28
  %v1307 = vunpack.c.l.b16 %v29
  %v1308 = vunpack.c.l.b16 %v30
  %v1309 = vunpack.c.l.b16 %v31
  %v1310 = vunpack.c.l.b16 %v32
  %v1311 = vunpack.c.l.b16 %v33
  %v1312 = vunpack.c.l.b16 %v34
  %v1313 = vunpack.c.l.b16 %v35
  %v1314 = vunpack.c.l.b16 %v36
  %v1315 = vunpack.c.l.b16 %v37
  %v1316 = vunpack.c.l.b16 %v38
  %v1317 = vunpack.c.l.b16 %v39
  %v1318 = vunpack.c.l.b16 %v40
  %v1319 = vunpack.c.l.b16 %v41
  %v1320 = vunpack.c.l.b16 %v42
  %v1321 = vpack.c.b16 %v1306, %v1305
  %v1322 = vpack.c.b16 %v1308, %v1307
  %v1323 = vpack.c.b16 %v1310, %v1309
  %v1324 = vpack.c.b16 %v1312, %v1311
  %v1325 = vpack.c.b16 %v1314, %v1313
  %v1326 = vpack.c.b16 %v1316, %v1315
  %v1327 = vpack.c.b16 %v1318, %v1317
  %v1328 = vpack.c.b16 %v1320, %v1319
  %1337 = vmatprep.subr.bf16.mxu0 0
  %1338 = vmatpush1.bf16.msra.mxu0 %v1321
  %1339 = vmatprep.subr.bf16.mxu0 0
  %1340 = vmatpush1.bf16.msra.mxu0 %v1322
  %1341 = vmatprep.subr.bf16.mxu0 0
  %1342 = vmatpush1.bf16.msra.mxu0 %v1323
  %1343 = vmatprep.subr.bf16.mxu0 0
  %1344 = vmatpush1.bf16.msra.mxu0 %v1324
  %1345 = vmatprep.subr.bf16.mxu0 0
  %1346 = vmatpush1.bf16.msra.mxu0 %v1325
  %1347 = vmatprep.subr.bf16.mxu0 0
  %1348 = vmatpush1.bf16.msra.mxu0 %v1326
  %1349 = vmatprep.subr.bf16.mxu0 0
  %1350 = vmatpush1.bf16.msra.mxu0 %v1327
  %1351 = vmatprep.subr.bf16.mxu0 0
  %1352 = vmatpush1.bf16.msra.mxu0 %v1328
  %1353 = vmatprep.subr.bf16.mxu0 0
  %1354 = vmatpush1.bf16.msra.mxu0 0
  %1355 = vmatprep.subr.bf16.mxu0 0
  %1356 = vmatpush1.bf16.msra.mxu0 0
  %1357 = vmatprep.subr.bf16.mxu0 0
  %1358 = vmatpush1.bf16.msra.mxu0 0
  %1359 = vmatprep.subr.bf16.mxu0 0
  %1360 = vmatpush1.bf16.msra.mxu0 0
  %1361 = vmatprep.subr.bf16.mxu0 0
  %1362 = vmatpush1.bf16.msra.mxu0 0
  %1363 = vmatprep.subr.bf16.mxu0 0
  %1364 = vmatpush1.bf16.msra.mxu0 0
  %1365 = vmatprep.subr.bf16.mxu0 0
  %1366 = vmatpush1.bf16.msra.mxu0 0
  %1367 = vmatprep.subr.bf16.mxu0 0
  %1368 = vmatpush1.bf16.msra.mxu0 0
  %1369 = vmatprep.mubr.bf16.mxu0 0
  %1370 = vmatmul.mubr.bf16.gmra.mrb[0].mxu0 %v1287
  %v1371 = vpop.f32.mrb[0].mxu0
  %v1372 = vadd.f32 %v48, %v1371
  %v1373 = vpop.f32.mrb[0].mxu0
  %v1374 = vpop.f32.mrb[0].mxu0
  %v1375 = vpop.f32.mrb[0].mxu0
  %1376 = vdwg.mxu0
  %1377 = vst [vmem:[%s4] sm:$0x3f] %v1372
  // Predicated region
  $region18: #{filmed_forward.1} parent=0 // pred_check
    _
  $region19: #{filmed_forward.1} parent=0 // pred_check_branch
    %1379 = sbr.rel (0) target = $region21
  $region20: #{filmed_forward.1} parent=0 // pred_region
    _
  $region21: #{filmed_forward.1} parent=0 // pred_fallthru
    _
  // Predicated region
  $region22: #{filmed_forward.1} parent=0 // pred_check
    _
  $region23: #{filmed_forward.1} parent=0 // pred_check_branch
    %1381 = sbr.rel (0) target = $region25
  $region24: #{filmed_forward.1} parent=0 // pred_region
    _
  $region25: #{filmed_forward.1} parent=0 // pred_fallthru
    _

</llo_original>
